<compile_context>
chip_gen: v5e
topology: v5e:2x2
jax: 0.10.0
libtpu: 0.0.40
codegen_flags: <defaults>
</compile_context>

<pallas_src>
import functools

import jax
import jax.numpy as jnp
from jax.experimental import pallas as pl
from jax.experimental.pallas import tpu as pltpu

_EPS = 1e-5  # PyTorch F.layer_norm default
_SUBLANE = 8


def _round_up(n, m):
    return ((n + m - 1) // m) * m


def _layernorm_kernel(x_ref, w_ref, o_ref, *, inv_d):
    # x_ref: (tm, dim) tile of rows; w_ref: (1, dim) weight; o_ref: (tm, dim).
    # Rows are independent; in a ragged last block the invalid rows compute
    # garbage but their stores are masked off by Pallas.
    x = x_ref[...].astype(jnp.float32)
    mean = jnp.sum(x, axis=-1, keepdims=True) * inv_d
    xm = x - mean
    var = jnp.sum(xm * xm, axis=-1, keepdims=True) * inv_d
    inv = jax.lax.rsqrt(var + _EPS)
    w = w_ref[...].astype(jnp.float32)
    o_ref[...] = (xm * inv * w).astype(o_ref.dtype)


def _pick_tm(rows, dim, in_bytes, out_bytes):
    """Row tile near the HBM-roofline knee with generous VMEM headroom."""
    try:
        vmem_cap = pltpu.get_tpu_info().vmem_capacity_bytes
    except Exception:  # pragma: no cover - conservative fallback
        vmem_cap = 64 << 20  # v7x per-TC physical ceiling
    # Modest budget: ~16 MiB of pipeline buffers max (roofline is already at
    # ~85% for 512-wide tiles; bigger buys nothing and hurts headroom on v7x).
    budget = min(vmem_cap // 8, 16 << 20)
    # Per-row VMEM: double-buffered input + output tiles plus ~2 f32
    # intermediates materialized in the kernel body.
    per_row = dim * (2 * (in_bytes + out_bytes) + 2 * 4)
    tm = budget // max(per_row, 1)
    tm = max(_SUBLANE, min(int(tm), 512))
    tm = (tm // _SUBLANE) * _SUBLANE
    if rows <= tm:
        # Single block covering all rows; a block dim equal to the full array
        # extent is exempt from the 8-row divisibility rule.
        return rows
    # Prefer >= 8 grid steps when there is enough work (better DMA overlap
    # and 2-TensorCore load balance on v7x).
    if pl.cdiv(rows, tm) < 8:
        tm = max(_SUBLANE, min(tm, _round_up(pl.cdiv(rows, 8), _SUBLANE)))
    return tm


def layer_norm(x, weight, *, out_dtype=None, block_rows=None):
    """x: [..., dim], weight: [dim].  Returns float32 (PyTorch semantics) by
    default; pass out_dtype=x.dtype to halve output HBM traffic for bf16.
    `block_rows` optionally forces the row-tile size (testing / tuning)."""
    dim = x.shape[-1]
    assert weight.shape == (dim,)
    if out_dtype is None:
        out_dtype = jnp.float32
    orig_shape = x.shape
    rows = 1
    for s in orig_shape[:-1]:
        rows *= s

    x2 = x.reshape(rows, dim)       # free reshape (contiguous)
    w2 = weight.reshape(1, dim)

    in_bytes = jnp.dtype(x.dtype).itemsize
    out_bytes = jnp.dtype(out_dtype).itemsize
    w_bytes = jnp.dtype(weight.dtype).itemsize

    if block_rows is None:
        tm = _pick_tm(rows, dim, in_bytes, out_bytes)
    else:
        tm = min(rows, max(_SUBLANE, (int(block_rows) // _SUBLANE) * _SUBLANE))
    grid = pl.cdiv(rows, tm)

    # VMEM: double-buffered in/out tiles + ~2 f32 intermediate tiles + weight.
    needed = tm * dim * (2 * (in_bytes + out_bytes) + 2 * 4) + 2 * dim * w_bytes
    vmem_limit = int(min(max(needed + (4 << 20), 16 << 20), 40 << 20))

    cost = pl.CostEstimate(
        flops=8 * rows * dim,
        transcendentals=rows,
        bytes_accessed=rows * dim * (in_bytes + out_bytes) + dim * w_bytes,
    )

    out = pl.pallas_call(
        functools.partial(_layernorm_kernel, inv_d=1.0 / dim),
        out_shape=jax.ShapeDtypeStruct((rows, dim), out_dtype),
        grid_spec=pltpu.PrefetchScalarGridSpec(
            num_scalar_prefetch=0,
            grid=(grid,),
            in_specs=[
                pl.BlockSpec((tm, dim), lambda i: (i, 0)),
                pl.BlockSpec((1, dim), lambda i: (0, 0)),
            ],
            out_specs=pl.BlockSpec((tm, dim), lambda i: (i, 0)),
        ),
        compiler_params=pltpu.CompilerParams(
            dimension_semantics=("parallel",),
            vmem_limit_bytes=vmem_limit,
        ),
        cost_estimate=cost,
    )(x2, w2)

    return out.reshape(orig_shape)


def _reference(x, weight):
    xf = x.astype(jnp.float32)
    xm = xf - jnp.mean(xf, axis=-1, keepdims=True)
    ref = xm * jax.lax.rsqrt(jnp.mean(xm * xm, axis=-1, keepdims=True) + _EPS)
    return ref * weight.astype(jnp.float32)


if __name__ == "__main__":
    key = jax.random.PRNGKey(0)
    kx, kw, kx2, kw2 = jax.random.split(key, 4)

    # Case 1: nicely aligned shapes (dim multiple of 128).
    batch, seq, dim = 2, 8, 128
    x = jax.random.normal(kx, (batch, seq, dim), dtype=jnp.float32)
    # Module init: weight = ones([dim]); perturb deterministically so the
    # learnable scale actually matters in the test.
    weight = jnp.ones((dim,), jnp.float32) + 0.1 * jax.random.normal(
        kw, (dim,), dtype=jnp.float32
    )
    y = layer_norm(x, weight)
    jax.block_until_ready(y)
    ref = _reference(x, weight)
    assert y.shape == x.shape and y.dtype == jnp.float32
    assert jnp.allclose(y, ref, atol=1e-4, rtol=1e-4)

    # Case 2: awkward shapes (odd row count, dim not a multiple of 128) —
    # exercises the full-extent block path (no wrapper padding at all).
    b2, s2, d2 = 2, 7, 96
    x2 = jax.random.normal(kx2, (b2, s2, d2), dtype=jnp.float32)
    w2 = jnp.ones((d2,), jnp.float32) + 0.1 * jax.random.normal(
        kw2, (d2,), dtype=jnp.float32
    )
    y2 = layer_norm(x2, w2)
    jax.block_until_ready(y2)
    ref2 = _reference(x2, w2)
    assert y2.shape == x2.shape and y2.dtype == jnp.float32
    assert jnp.allclose(y2, ref2, atol=1e-4, rtol=1e-4)

    # Case 3: force a multi-step grid with a ragged last block
    # (rows=14, tm=8 -> grid=2, last block half valid) to exercise masked
    # edge stores — the path large inputs hit when rows % tm != 0.
    y3 = layer_norm(x2, w2, block_rows=8)
    jax.block_until_ready(y3)
    assert y3.shape == x2.shape and y3.dtype == jnp.float32
    assert jnp.allclose(y3, ref2, atol=1e-4, rtol=1e-4)

    print("KERNEL_OK")
</pallas_src>

<mosaic_0001>
module attributes {stable_mosaic.version = 11 : i64} {
  func.func @_layernorm_kernel(%arg0: i32, %arg1: memref<16x128xf32, #tpu.memory_space<vmem>>, %arg2: memref<1x128xf32, #tpu.memory_space<vmem>>, %arg3: memref<16x128xf32, #tpu.memory_space<vmem>>) attributes {dimension_semantics = [#tpu.dimension_semantics<parallel>], iteration_bounds = array<i64: 1>, scalar_prefetch = 0 : i64, scratch_operands = 0 : i64, tpu.core_type = #tpu.core_type<tc>, window_params = [{transform_indices = @transform_0, window_bounds = array<i64: 16, 128>}, {pipeline_mode = #tpu.pipeline_mode<synchronous>, transform_indices = @transform_1, window_bounds = array<i64: 1, 128>}, {transform_indices = @transform_2, window_bounds = array<i64: 16, 128>}]} {
    %c0 = arith.constant 0 : index
    %c0_0 = arith.constant 0 : index
    %0 = vector.load %arg1[%c0, %c0_0] : memref<16x128xf32, #tpu.memory_space<vmem>>, vector<16x128xf32>
    %cst = arith.constant dense<0.000000e+00> : vector<16xf32>
    %1 = vector.multi_reduction <add>, %0, %cst [1] : vector<16x128xf32> to vector<16xf32>
    %2 = vector.shape_cast %1 : vector<16xf32> to vector<16x1xf32>
    %cst_1 = arith.constant 7.812500e-03 : f32
    %3 = vector.broadcast %cst_1 : f32 to vector<16x1xf32>
    %4 = arith.mulf %2, %3 : vector<16x1xf32>
    %5 = vector.broadcast %4 : vector<16x1xf32> to vector<16x128xf32>
    %6 = arith.subf %0, %5 : vector<16x128xf32>
    %7 = arith.mulf %6, %6 : vector<16x128xf32>
    %cst_2 = arith.constant dense<0.000000e+00> : vector<16xf32>
    %8 = vector.multi_reduction <add>, %7, %cst_2 [1] : vector<16x128xf32> to vector<16xf32>
    %9 = vector.shape_cast %8 : vector<16xf32> to vector<16x1xf32>
    %cst_3 = arith.constant 7.812500e-03 : f32
    %10 = vector.broadcast %cst_3 : f32 to vector<16x1xf32>
    %11 = arith.mulf %9, %10 : vector<16x1xf32>
    %cst_4 = arith.constant 9.99999974E-6 : f32
    %12 = vector.broadcast %cst_4 : f32 to vector<16x1xf32>
    %13 = arith.addf %11, %12 : vector<16x1xf32>
    %14 = math.rsqrt %13 : vector<16x1xf32>
    %c0_5 = arith.constant 0 : index
    %c0_6 = arith.constant 0 : index
    %15 = vector.load %arg2[%c0_5, %c0_6] : memref<1x128xf32, #tpu.memory_space<vmem>>, vector<1x128xf32>
    %16 = vector.broadcast %14 : vector<16x1xf32> to vector<16x128xf32>
    %17 = arith.mulf %6, %16 : vector<16x128xf32>
    %18 = vector.broadcast %15 : vector<1x128xf32> to vector<16x128xf32>
    %19 = arith.mulf %17, %18 : vector<16x128xf32>
    %c0_7 = arith.constant 0 : index
    %c0_8 = arith.constant 0 : index
    %20 = vector.load %arg3[%c0_7, %c0_8] : memref<16x128xf32, #tpu.memory_space<vmem>>, vector<16x128xf32>
    tpu.vector_store %arg3[%c0_7, %c0_8], %19 {strides = array<i32>} : memref<16x128xf32, #tpu.memory_space<vmem>>, vector<16x128xf32>,
    return
  }
  func.func @transform_0(%arg0: i32) -> (i32, i32) {
    %c0_i32 = arith.constant 0 : i32
    %c0_i32_0 = arith.constant 0 : i32
    return %arg0, %c0_i32 : i32, i32
  }
  func.func @transform_1(%arg0: i32) -> (i32, i32) {
    %c0_i32 = arith.constant 0 : i32
    %c0_i32_0 = arith.constant 0 : i32
    %c0_i32_1 = arith.constant 0 : i32
    return %c0_i32, %c0_i32_0 : i32, i32
  }
  func.func @transform_2(%arg0: i32) -> (i32, i32) {
    %c0_i32 = arith.constant 0 : i32
    %c0_i32_0 = arith.constant 0 : i32
    return %arg0, %c0_i32 : i32, i32
  }
}

</mosaic_0001>

<llo_original>
// kernel: tpu_custom_call.1
$region0: #{tpu_custom_call.1}
  #allocation0 [shape = 'u32[]', space=smem, size = 0x4, offset = 0x4, fixed_abs, tag = 'smem constant byte address 0x4 - core index']
  #allocation1 [shape = 'u32[72,128]{1,0:T(1,128)}', space=vmem, size = 0x9000, scoped, tag = 'internal scratch']
  %s0 = inlined_call_operand.hbm [shape: f32[16,128], index: 0, kind: input, shape index: {}]
  %s1 = inlined_call_operand.hbm [shape: f32[1,128], index: 1, kind: input, shape index: {}]
  %s2 = inlined_call_operand.hbm [shape: f32[16,128], index: 2, kind: output, shape index: {}]
  %s3 = sld [smem:[#allocation0]]
  $region26: #{tpu_custom_call.1} parent=0
    _
  %s5 = ssub.s32 1, %s3
  %s6 = scalar_select 0, %s5, %s3
  $region1: #{tpu_custom_call.1} parent=0
    #allocation2 [shape = 'u8[8192]{0}', space=vmem, size = 0x2000, scoped, tag = 'input window, operand 0, single buffered']
    #allocation3 [shape = 's32[1]{0}', space=sflag, size = 0x4, scoped, tag = 'scoped memory for tpu_custom_call.1']
    #allocation4 [shape = 's32[1]{0}', space=sflag, size = 0x4, scoped, tag = 'scoped memory for tpu_custom_call.1']
    #allocation5 [shape = 'u8[512]{0}', space=vmem, size = 0x400, scoped, tag = 'input window, operand 1, single buffered']
    #allocation6 [shape = 's32[1]{0}', space=sflag, size = 0x4, scoped, tag = 'scoped memory for tpu_custom_call.1']
    #allocation7 [shape = 'u8[8192]{0}', space=vmem, size = 0x2000, scoped, tag = 'output window, operand 0, single buffered']
    %7 = vsyncpa [#allocation3], 0
    %8 = vsyncpa [#allocation6], 0
    %9 = vsyncpa [#allocation4], 0
    // Predicated region
    $region2: #{tpu_custom_call.1} parent=1 // pred_check
      _
    $region3: #{tpu_custom_call.1} parent=1 // pred_check_branch
      %11 = sbr.rel (0) target = $region5
    $region4: #{tpu_custom_call.1} parent=1 // pred_region
      %13 = vsyncadd [#allocation3], 0
      %s14 = sshll.u32 %s0, 4
      %s15 = int_to_ptr.hbm [resolvable:$true] %s14
      %s16 = sshll.u32 [#allocation2], 4
      %s17 = int_to_ptr.vmem [resolvable:$true] %s16
      %22 = dma.hbm_to_vmem [thread:$0]  %s15, 256, %s17, [#allocation3], 128, 128, 8
    $region5: #{tpu_custom_call.1} parent=1 // pred_fallthru
      _
    // Predicated region
    $region6: #{tpu_custom_call.1} parent=1 // pred_check
      _
    $region7: #{tpu_custom_call.1} parent=1 // pred_check_branch
      %24 = sbr.rel (0) target = $region9
    $region8: #{tpu_custom_call.1} parent=1 // pred_region
      %26 = vsyncadd [#allocation6], 0
      %s28 = sshll.u32 %s1, 4
      %s29 = int_to_ptr.hbm [resolvable:$true] %s28
      %s30 = sshll.u32 [#allocation5], 4
      %s31 = int_to_ptr.vmem [resolvable:$true] %s30
      %33 = dma.hbm_to_vmem [thread:$0]  %s29, 16, %s31, [#allocation6]
    $region9: #{tpu_custom_call.1} parent=1 // pred_fallthru
      _
    // Predicated region
    $region10: #{tpu_custom_call.1} parent=1 // pred_check
      _
    $region11: #{tpu_custom_call.1} parent=1 // pred_check_branch
      %35 = sbr.rel (0) target = $region13
    $region12: #{tpu_custom_call.1} parent=1 // pred_region
      %37 = dma.done [#allocation3], 256
    $region13: #{tpu_custom_call.1} parent=1 // pred_fallthru
      _
    // Predicated region
    $region14: #{tpu_custom_call.1} parent=1 // pred_check
      _
    $region15: #{tpu_custom_call.1} parent=1 // pred_check_branch
      %39 = sbr.rel (0) target = $region17
    $region16: #{tpu_custom_call.1} parent=1 // pred_region
      %41 = dma.done [#allocation6], 16
    $region17: #{tpu_custom_call.1} parent=1 // pred_fallthru
      _
    %v42 = vld [vmem:[#allocation2] sm:$0xff]
    %v43 = vld [vmem:[#allocation2 + $0x8] sm:$0xff]
    %44 = vadd.xlane.f32.xlu0 %v42
    %v45 = vpop.xlane.xlu0 %44
    %46 = vadd.xlane.f32.xlu0 %v43
    %v47 = vpop.xlane.xlu0 %46
    %v48 = vmul.f32 %v45, 0.0078125
    %v49 = vmul.f32 %v47, 0.0078125
    %v50 = vsub.f32 %v42, %v48
    %v51 = vsub.f32 %v43, %v49
    %v52 = vmul.f32 %v50, %v50
    %v53 = vmul.f32 %v51, %v51
    %54 = vadd.xlane.f32.xlu0 %v52
    %v55 = vpop.xlane.xlu0 %54
    %56 = vadd.xlane.f32.xlu0 %v53
    %v57 = vpop.xlane.xlu0 %56
    %v58 = vmul.f32 %v55, 0.0078125
    %v59 = vmul.f32 %v57, 0.0078125
    %v60 = vadd.f32 %v58, 1e-05
    %v61 = vadd.f32 %v59, 1e-05
    %v62 = vrsqrt.pop %v60
    %v63 = vmul.f32 %v62, %v60
    %v64 = vmul.f32 %v63, %v62
    %v65 = vmul.f32 0.5, %v64
    %v66 = vsub.f32 1.5, %v65
    %v67 = vmul.f32 %v62, %v66
    %vm68 = vweird.f32 %v60
    %vm69 = vweird.f32 %v62
    %vm70 = vmor %vm68, %vm69
    %v71 = vsel %vm70, %v62, %v67
    %v72 = vrsqrt.pop %v61
    %v73 = vmul.f32 %v72, %v61
    %v74 = vmul.f32 %v73, %v72
    %v75 = vmul.f32 0.5, %v74
    %v76 = vsub.f32 1.5, %v75
    %v77 = vmul.f32 %v72, %v76
    %vm78 = vweird.f32 %v61
    %vm79 = vweird.f32 %v72
    %vm80 = vmor %vm78, %vm79
    %v81 = vsel %vm80, %v72, %v77
    %v82 = vld [vmem:[#allocation5] sm:$0x1]
    %v83 = vmul.f32 %v50, %v71
    %v84 = vmul.f32 %v51, %v81
    %v86 = vperm.slane %v82, 0
    %v88 = vmul.f32 %v83, %v86
    %v89 = vmul.f32 %v84, %v86
    %90 = vst [vmem:[#allocation7] sm:$0xff] %v88
    %91 = vst [vmem:[#allocation7 + $0x8] sm:$0xff] %v89
    // Predicated region
    $region18: #{tpu_custom_call.1} parent=1 // pred_check
      _
    $region19: #{tpu_custom_call.1} parent=1 // pred_check_branch
      %93 = sbr.rel (0) target = $region21
    $region20: #{tpu_custom_call.1} parent=1 // pred_region
      %95 = vsyncadd [#allocation4], 0
      %s96 = sshll.u32 [#allocation7], 4
      %s97 = int_to_ptr.vmem [resolvable:$true] %s96
      %s98 = sshll.u32 %s2, 4
      %s99 = int_to_ptr.hbm [resolvable:$true] %s98
      %104 = dma.vmem_to_hbm [thread:$0]  %s97, 256, %s99, [#allocation4], 128, 128, 8
    $region21: #{tpu_custom_call.1} parent=1 // pred_fallthru
      _
    // Predicated region
    $region22: #{tpu_custom_call.1} parent=1 // pred_check
      _
    $region23: #{tpu_custom_call.1} parent=1 // pred_check_branch
      %106 = sbr.rel (0) target = $region25
    $region24: #{tpu_custom_call.1} parent=1 // pred_region
      %108 = dma.done [#allocation4], 256
    $region25: #{tpu_custom_call.1} parent=1 // pred_fallthru
      _
    %109 = vsyncpa [#allocation3], 1
    %110 = vsyncpa [#allocation6], 1
    %111 = vsyncpa [#allocation4], 1

</llo_original>
